<compile_context>
chip_gen: v7x
topology: tpu7x:2x2x1
jax: 0.10.0
libtpu: 0.0.40
codegen_flags: <defaults>
</compile_context>

<pallas_src>
import numpy as np
import jax
import jax.numpy as jnp
from jax import lax
from jax.experimental import pallas as pl
from jax.experimental.pallas import tpu as pltpu

H = W = 16
HW = H * W          # 256 pixels per image (power of two)
IN_C = 16           # in_channels (== out_channels * expansion, residual add requires it)
MID_C = 4           # out_channels
MID_P = 8           # mid channels padded to a full f32 sublane tile
OUT_C = MID_C * 4   # out_channels * expansion
K2P = 9 * MID_P     # padded im2col contraction size for the 3x3 conv
EPS = 1e-5


def bottleneck_kernel(x_ref, w1_ref, b1_ref, w2_ref, b2_ref, w3_ref, b3_ref, o_ref):
    L = x_ref.shape[1]                      # nb * HW fused (image, pixel) lanes

    # Within-image pixel coordinates of every fused lane (hoisted; shared by all taps).
    # HW and W are powers of two -> bit ops instead of div/mod.
    pos = lax.broadcasted_iota(jnp.int32, (MID_P, L), 1) & (HW - 1)
    xpos = pos & (W - 1)
    ypos = pos >> 4                         # == pos // W  (W = 16)
    x_ok = {-1: xpos > 0, 0: None, 1: xpos < W - 1}
    y_ok = {-1: ypos > 0, 0: None, 1: ypos < H - 1}

    # --- conv1 (1x1, BN1 scale pre-folded into w1) + bias + ReLU -------------------
    h1 = jnp.dot(w1_ref[...], x_ref[...].astype(jnp.bfloat16),
                 preferred_element_type=jnp.float32)            # (MID_P, L) f32
    h1 = jnp.maximum(h1 + b1_ref[...], 0.0)                     # padded rows stay 0

    # --- conv2 (3x3, pad=1, stride=1): in-register im2col via 9 XLU lane rolls +
    #     edge masks, then a single K=72 MXU matmul -------------------------------
    taps = []
    for k in range(9):                      # static unroll over the 3x3 taps
        dy, dx = k // 3 - 1, k % 3 - 1
        d = dy * W + dx                     # flattened-pixel offset of this tap
        v = pltpu.roll(h1, shift=(-d) % L, axis=1) if d != 0 else h1
        m = y_ok[dy]
        if x_ok[dx] is not None:
            m = x_ok[dx] if m is None else m & x_ok[dx]
        if m is not None:
            # Zero lanes whose source pixel lies outside its own image; this also
            # kills every cross-image value the cyclic roll wrapped around.
            v = jnp.where(m, v, 0.0)
        taps.append(v)
    col = jnp.concatenate(taps, axis=0)     # (K2P, L) f32, tile-aligned vreg stacking
    h2 = jnp.dot(w2_ref[...], col.astype(jnp.bfloat16),
                 preferred_element_type=jnp.float32)            # (MID_C, L)
    h2 = jnp.maximum(h2 + b2_ref[...], 0.0)

    # --- conv3 (1x1) + bias + residual add + ReLU: fully lane-dense store ----------
    h3 = jnp.dot(w3_ref[...], h2.astype(jnp.bfloat16),
                 preferred_element_type=jnp.float32)            # (OUT_C, L)
    o_ref[...] = jnp.maximum(h3 + b3_ref[...] + x_ref[...], 0.0)


def _dual_tensorcore():
    """True on chips with two TensorCores behind one device (v4/v5p/v7x); False on
    single-TC v5e/v6e, where a grid split is just a serial-overhead loop."""
    try:
        kind = jax.devices()[0].device_kind.lower()
    except Exception:
        return False
    return not any(t in kind for t in ("lite", "v5e", "v6e", "v2", "v3"))


def bottleneck_block(x_nchw, kparams):
    (w1, b1, w2, b2, w3, b3) = kparams
    n = x_nchw.shape[0]
    # Generation-aware grid: 2-way "parallel" batch split only where a second
    # TensorCore can pick it up; otherwise a single step (grid iterations are serial).
    grid = 2 if (_dual_tensorcore() and n >= 2 and n % 2 == 0) else 1
    nb = n // grid
    L = nb * HW

    # Channel-major with batch fused into lanes: (IN_C, N*HW). Pure layout plumbing.
    x_cl = x_nchw.transpose(1, 0, 2, 3).reshape(IN_C, n * HW)

    def wspec(a):
        return pl.BlockSpec(a.shape, lambda g: (0, 0))

    out = pl.pallas_call(
        bottleneck_kernel,
        out_shape=jax.ShapeDtypeStruct((OUT_C, n * HW), jnp.float32),
        grid_spec=pltpu.PrefetchScalarGridSpec(
            num_scalar_prefetch=0,
            grid=(grid,),
            in_specs=[
                pl.BlockSpec((IN_C, L), lambda g: (0, g)),
                wspec(w1), wspec(b1),
                wspec(w2), wspec(b2),
                wspec(w3), wspec(b3),
            ],
            out_specs=pl.BlockSpec((OUT_C, L), lambda g: (0, g)),
        ),
        compiler_params=pltpu.CompilerParams(
            dimension_semantics=("parallel",)),
        cost_estimate=pl.CostEstimate(
            flops=2 * (IN_C * MID_C + 9 * MID_C * MID_C + MID_C * OUT_C) * HW * n,
            transcendentals=0,
            bytes_accessed=(IN_C + OUT_C) * HW * n * 4),
    )(x_cl, w1, b1, w2, b2, w3, b3)
    return out.reshape(OUT_C, n, H, W).transpose(1, 0, 2, 3)


def make_params(key):
    keys = jax.random.split(key, 18)

    # conv weights in PyTorch OIHW layout (also used by the lax.conv reference)
    w1 = 0.3 * jax.random.normal(keys[0], (MID_C, IN_C, 1, 1), jnp.float32)
    b1c = 0.1 * jax.random.normal(keys[1], (MID_C,), jnp.float32)
    w2 = 0.2 * jax.random.normal(keys[2], (MID_C, MID_C, 3, 3), jnp.float32)
    b2c = 0.1 * jax.random.normal(keys[3], (MID_C,), jnp.float32)
    w3 = 0.3 * jax.random.normal(keys[4], (OUT_C, MID_C, 1, 1), jnp.float32)
    b3c = 0.1 * jax.random.normal(keys[5], (OUT_C,), jnp.float32)

    def bn_fold(kg, kb, km, kv, conv_bias, c):
        gamma = 1.0 + 0.1 * jax.random.normal(keys[kg], (c,), jnp.float32)
        beta = 0.1 * jax.random.normal(keys[kb], (c,), jnp.float32)
        mean = 0.1 * jax.random.normal(keys[km], (c,), jnp.float32)
        var = 1.0 + 0.5 * jnp.abs(jax.random.normal(keys[kv], (c,), jnp.float32))
        scale = gamma / jnp.sqrt(var + EPS)
        bias = beta + (conv_bias - mean) * scale
        return scale, bias

    s1, b1 = bn_fold(6, 7, 8, 9, b1c, MID_C)
    s2, b2 = bn_fold(10, 11, 12, 13, b2c, MID_C)
    s3, b3 = bn_fold(14, 15, 16, 17, b3c, OUT_C)

    # Kernel-side params: BN scales folded into the conv weights in f32, then cast to
    # bf16 in out-channel-major matmul layout. Mid channels padded 4 -> MID_P so each
    # im2col tap is a full f32 sublane tile (tile-aligned in-register concat).
    w1k = jnp.zeros((MID_P, IN_C), jnp.float32).at[:MID_C].set(
        w1[:, :, 0, 0] * s1[:, None]).astype(jnp.bfloat16)                      # (8, 16)
    b1k = jnp.zeros((MID_P, 1), jnp.float32).at[:MID_C, 0].set(b1)
    w2k = jnp.zeros((MID_C, 3, 3, MID_P), jnp.float32).at[:, :, :, :MID_C].set(
        (w2 * s2[:, None, None, None]).transpose(0, 2, 3, 1)
    ).reshape(MID_C, K2P).astype(jnp.bfloat16)                                  # (4, 72)
    b2k = b2.reshape(MID_C, 1)
    w3k = (w3[:, :, 0, 0] * s3[:, None]).astype(jnp.bfloat16)                   # (16, 4)
    b3k = b3.reshape(OUT_C, 1)

    kparams = (w1k, b1k, w2k, b2k, w3k, b3k)
    rparams = (w1, s1, b1, w2, s2, b2, w3, s3, b3)
    return kparams, rparams


def reference(x, rparams):
    (w1, s1, b1, w2, s2, b2, w3, s3, b3) = rparams
    dn = ('NCHW', 'OIHW', 'NCHW')
    hp = lax.Precision.HIGHEST

    def bn(y, s, b):
        return y * s.reshape(1, -1, 1, 1) + b.reshape(1, -1, 1, 1)

    y = lax.conv_general_dilated(x, w1, (1, 1), 'VALID', dimension_numbers=dn, precision=hp)
    y = jnp.maximum(bn(y, s1, b1), 0.0)
    y = lax.conv_general_dilated(y, w2, (1, 1), ((1, 1), (1, 1)), dimension_numbers=dn,
                                 precision=hp)
    y = jnp.maximum(bn(y, s2, b2), 0.0)
    y = lax.conv_general_dilated(y, w3, (1, 1), 'VALID', dimension_numbers=dn, precision=hp)
    y = bn(y, s3, b3)
    return jnp.maximum(y + x, 0.0)


if __name__ == "__main__":
    root = jax.random.PRNGKey(0)
    kp, kx = jax.random.split(root)
    kparams, rparams = make_params(kp)
    x = jax.random.normal(kx, (2, IN_C, H, W), jnp.float32)     # NCHW, like the PyTorch module

    out = jax.block_until_ready(bottleneck_block(x, kparams))
    ref = jax.block_until_ready(reference(x, rparams))

    # bf16 MXU inputs with f32 accumulation vs a HIGHEST-precision f32 reference
    np.testing.assert_allclose(np.asarray(out), np.asarray(ref), rtol=2e-2, atol=3e-2)
    print("KERNEL_OK")
</pallas_src>

<mosaic_0001>
module attributes {stable_mosaic.version = 11 : i64} {
  func.func @bottleneck_kernel(%arg0: i32, %arg1: memref<16x256xf32, #tpu.memory_space<vmem>>, %arg2: memref<8x16xbf16, #tpu.memory_space<vmem>>, %arg3: memref<8x1xf32, #tpu.memory_space<vmem>>, %arg4: memref<4x72xbf16, #tpu.memory_space<vmem>>, %arg5: memref<4x1xf32, #tpu.memory_space<vmem>>, %arg6: memref<16x4xbf16, #tpu.memory_space<vmem>>, %arg7: memref<16x1xf32, #tpu.memory_space<vmem>>, %arg8: memref<16x256xf32, #tpu.memory_space<vmem>>) attributes {dimension_semantics = [#tpu.dimension_semantics<parallel>], iteration_bounds = array<i64: 2>, scalar_prefetch = 0 : i64, scratch_operands = 0 : i64, tpu.core_type = #tpu.core_type<tc>, window_params = [{transform_indices = @transform_0, window_bounds = array<i64: 16, 256>}, {pipeline_mode = #tpu.pipeline_mode<synchronous>, transform_indices = @transform_1, window_bounds = array<i64: 8, 16>}, {pipeline_mode = #tpu.pipeline_mode<synchronous>, transform_indices = @transform_2, window_bounds = array<i64: 8, 1>}, {pipeline_mode = #tpu.pipeline_mode<synchronous>, transform_indices = @transform_3, window_bounds = array<i64: 4, 72>}, {pipeline_mode = #tpu.pipeline_mode<synchronous>, transform_indices = @transform_4, window_bounds = array<i64: 4, 1>}, {pipeline_mode = #tpu.pipeline_mode<synchronous>, transform_indices = @transform_5, window_bounds = array<i64: 16, 4>}, {pipeline_mode = #tpu.pipeline_mode<synchronous>, transform_indices = @transform_6, window_bounds = array<i64: 16, 1>}, {transform_indices = @transform_7, window_bounds = array<i64: 16, 256>}]} {
    %0 = tpu.iota {dimensions = array<i32: 1>} : vector<8x256xi32>
    %c255_i32 = arith.constant 255 : i32
    %1 = vector.broadcast %c255_i32 : i32 to vector<8x256xi32>
    %2 = arith.andi %0, %1 : vector<8x256xi32>
    %c15_i32 = arith.constant 15 : i32
    %3 = vector.broadcast %c15_i32 : i32 to vector<8x256xi32>
    %4 = arith.andi %2, %3 : vector<8x256xi32>
    %c4_i32 = arith.constant 4 : i32
    %5 = vector.broadcast %c4_i32 : i32 to vector<8x256xi32>
    %6 = arith.shrsi %2, %5 : vector<8x256xi32>
    %c0_i32 = arith.constant 0 : i32
    %7 = vector.broadcast %c0_i32 : i32 to vector<8x256xi32>
    %8 = arith.cmpi sgt, %4, %7 : vector<8x256xi32>
    %c15_i32_0 = arith.constant 15 : i32
    %9 = vector.broadcast %c15_i32_0 : i32 to vector<8x256xi32>
    %10 = arith.cmpi slt, %4, %9 : vector<8x256xi32>
    %c0_i32_1 = arith.constant 0 : i32
    %11 = vector.broadcast %c0_i32_1 : i32 to vector<8x256xi32>
    %12 = arith.cmpi sgt, %6, %11 : vector<8x256xi32>
    %c15_i32_2 = arith.constant 15 : i32
    %13 = vector.broadcast %c15_i32_2 : i32 to vector<8x256xi32>
    %14 = arith.cmpi slt, %6, %13 : vector<8x256xi32>
    %c0 = arith.constant 0 : index
    %c0_3 = arith.constant 0 : index
    %15 = vector.load %arg2[%c0, %c0_3] : memref<8x16xbf16, #tpu.memory_space<vmem>>, vector<8x16xbf16>
    %c0_4 = arith.constant 0 : index
    %c0_5 = arith.constant 0 : index
    %16 = vector.load %arg1[%c0_4, %c0_5] : memref<16x256xf32, #tpu.memory_space<vmem>>, vector<16x256xf32>
    %17 = arith.truncf %16 : vector<16x256xf32> to vector<16x256xbf16>
    %cst = arith.constant dense<0.000000e+00> : vector<8x256xf32>
    %18 = tpu.matmul %15, %17, %cst {dimension_numbers = #tpu.dot_dimension_numbers<[1], [0], [0], [1], [0, 0, 1, 1], [], []>} : vector<8x16xbf16>, vector<16x256xbf16>, vector<8x256xf32> -> vector<8x256xf32>
    %c0_6 = arith.constant 0 : index
    %c0_7 = arith.constant 0 : index
    %19 = vector.load %arg3[%c0_6, %c0_7] : memref<8x1xf32, #tpu.memory_space<vmem>>, vector<8x1xf32>
    %20 = vector.broadcast %19 : vector<8x1xf32> to vector<8x256xf32>
    %21 = arith.addf %18, %20 : vector<8x256xf32>
    %cst_8 = arith.constant 0.000000e+00 : f32
    %22 = vector.broadcast %cst_8 : f32 to vector<8x256xf32>
    %23 = arith.maximumf %21, %22 : vector<8x256xf32>
    %c17_i32 = arith.constant 17 : i32
    %24 = tpu.dynamic_rotate %23 by %c17_i32 dim 1 : vector<8x256xf32>, i32 -> vector<8x256xf32>
    %25 = arith.andi %12, %8 : vector<8x256xi1>
    %cst_9 = arith.constant 0.000000e+00 : f32
    %26 = vector.broadcast %cst_9 : f32 to vector<8x256xf32>
    %27 = arith.select %25, %24, %26 : vector<8x256xi1>, vector<8x256xf32>
    %c16_i32 = arith.constant 16 : i32
    %28 = tpu.dynamic_rotate %23 by %c16_i32 dim 1 : vector<8x256xf32>, i32 -> vector<8x256xf32>
    %cst_10 = arith.constant 0.000000e+00 : f32
    %29 = vector.broadcast %cst_10 : f32 to vector<8x256xf32>
    %30 = arith.select %12, %28, %29 : vector<8x256xi1>, vector<8x256xf32>
    %c15_i32_11 = arith.constant 15 : i32
    %31 = tpu.dynamic_rotate %23 by %c15_i32_11 dim 1 : vector<8x256xf32>, i32 -> vector<8x256xf32>
    %32 = arith.andi %12, %10 : vector<8x256xi1>
    %cst_12 = arith.constant 0.000000e+00 : f32
    %33 = vector.broadcast %cst_12 : f32 to vector<8x256xf32>
    %34 = arith.select %32, %31, %33 : vector<8x256xi1>, vector<8x256xf32>
    %c1_i32 = arith.constant 1 : i32
    %35 = tpu.dynamic_rotate %23 by %c1_i32 dim 1 : vector<8x256xf32>, i32 -> vector<8x256xf32>
    %cst_13 = arith.constant 0.000000e+00 : f32
    %36 = vector.broadcast %cst_13 : f32 to vector<8x256xf32>
    %37 = arith.select %8, %35, %36 : vector<8x256xi1>, vector<8x256xf32>
    %c255_i32_14 = arith.constant 255 : i32
    %38 = tpu.dynamic_rotate %23 by %c255_i32_14 dim 1 : vector<8x256xf32>, i32 -> vector<8x256xf32>
    %cst_15 = arith.constant 0.000000e+00 : f32
    %39 = vector.broadcast %cst_15 : f32 to vector<8x256xf32>
    %40 = arith.select %10, %38, %39 : vector<8x256xi1>, vector<8x256xf32>
    %c241_i32 = arith.constant 241 : i32
    %41 = tpu.dynamic_rotate %23 by %c241_i32 dim 1 : vector<8x256xf32>, i32 -> vector<8x256xf32>
    %42 = arith.andi %14, %8 : vector<8x256xi1>
    %cst_16 = arith.constant 0.000000e+00 : f32
    %43 = vector.broadcast %cst_16 : f32 to vector<8x256xf32>
    %44 = arith.select %42, %41, %43 : vector<8x256xi1>, vector<8x256xf32>
    %c240_i32 = arith.constant 240 : i32
    %45 = tpu.dynamic_rotate %23 by %c240_i32 dim 1 : vector<8x256xf32>, i32 -> vector<8x256xf32>
    %cst_17 = arith.constant 0.000000e+00 : f32
    %46 = vector.broadcast %cst_17 : f32 to vector<8x256xf32>
    %47 = arith.select %14, %45, %46 : vector<8x256xi1>, vector<8x256xf32>
    %c239_i32 = arith.constant 239 : i32
    %48 = tpu.dynamic_rotate %23 by %c239_i32 dim 1 : vector<8x256xf32>, i32 -> vector<8x256xf32>
    %49 = arith.andi %14, %10 : vector<8x256xi1>
    %cst_18 = arith.constant 0.000000e+00 : f32
    %50 = vector.broadcast %cst_18 : f32 to vector<8x256xf32>
    %51 = arith.select %49, %48, %50 : vector<8x256xi1>, vector<8x256xf32>
    %52 = tpu.concatenate %27, %30, %34, %37, %23, %40, %44, %47, %51 in 0 : vector<8x256xf32>, vector<8x256xf32>, vector<8x256xf32>, vector<8x256xf32>, vector<8x256xf32>, vector<8x256xf32>, vector<8x256xf32>, vector<8x256xf32>, vector<8x256xf32> -> vector<72x256xf32>
    %c0_19 = arith.constant 0 : index
    %c0_20 = arith.constant 0 : index
    %53 = vector.load %arg4[%c0_19, %c0_20] : memref<4x72xbf16, #tpu.memory_space<vmem>>, vector<4x72xbf16>
    %54 = arith.truncf %52 : vector<72x256xf32> to vector<72x256xbf16>
    %cst_21 = arith.constant dense<0.000000e+00> : vector<4x256xf32>
    %55 = tpu.matmul %53, %54, %cst_21 {dimension_numbers = #tpu.dot_dimension_numbers<[1], [0], [0], [1], [0, 0, 1, 1], [], []>} : vector<4x72xbf16>, vector<72x256xbf16>, vector<4x256xf32> -> vector<4x256xf32>
    %c0_22 = arith.constant 0 : index
    %c0_23 = arith.constant 0 : index
    %56 = vector.load %arg5[%c0_22, %c0_23] : memref<4x1xf32, #tpu.memory_space<vmem>>, vector<4x1xf32>
    %57 = vector.broadcast %56 : vector<4x1xf32> to vector<4x256xf32>
    %58 = arith.addf %55, %57 : vector<4x256xf32>
    %cst_24 = arith.constant 0.000000e+00 : f32
    %59 = vector.broadcast %cst_24 : f32 to vector<4x256xf32>
    %60 = arith.maximumf %58, %59 : vector<4x256xf32>
    %c0_25 = arith.constant 0 : index
    %c0_26 = arith.constant 0 : index
    %61 = vector.load %arg6[%c0_25, %c0_26] : memref<16x4xbf16, #tpu.memory_space<vmem>>, vector<16x4xbf16>
    %62 = arith.truncf %60 : vector<4x256xf32> to vector<4x256xbf16>
    %cst_27 = arith.constant dense<0.000000e+00> : vector<16x256xf32>
    %63 = tpu.matmul %61, %62, %cst_27 {dimension_numbers = #tpu.dot_dimension_numbers<[1], [0], [0], [1], [0, 0, 1, 1], [], []>} : vector<16x4xbf16>, vector<4x256xbf16>, vector<16x256xf32> -> vector<16x256xf32>
    %c0_28 = arith.constant 0 : index
    %c0_29 = arith.constant 0 : index
    %64 = vector.load %arg7[%c0_28, %c0_29] : memref<16x1xf32, #tpu.memory_space<vmem>>, vector<16x1xf32>
    %65 = vector.broadcast %64 : vector<16x1xf32> to vector<16x256xf32>
    %66 = arith.addf %63, %65 : vector<16x256xf32>
    %c0_30 = arith.constant 0 : index
    %c0_31 = arith.constant 0 : index
    %67 = vector.load %arg1[%c0_30, %c0_31] : memref<16x256xf32, #tpu.memory_space<vmem>>, vector<16x256xf32>
    %68 = arith.addf %66, %67 : vector<16x256xf32>
    %cst_32 = arith.constant 0.000000e+00 : f32
    %69 = vector.broadcast %cst_32 : f32 to vector<16x256xf32>
    %70 = arith.maximumf %68, %69 : vector<16x256xf32>
    %c0_33 = arith.constant 0 : index
    %c0_34 = arith.constant 0 : index
    %71 = vector.load %arg8[%c0_33, %c0_34] : memref<16x256xf32, #tpu.memory_space<vmem>>, vector<16x256xf32>
    tpu.vector_store %arg8[%c0_33, %c0_34], %70 {strides = array<i32>} : memref<16x256xf32, #tpu.memory_space<vmem>>, vector<16x256xf32>,
    return
  }
  func.func @transform_0(%arg0: i32) -> (i32, i32) {
    %c0_i32 = arith.constant 0 : i32
    %c0_i32_0 = arith.constant 0 : i32
    return %c0_i32, %arg0 : i32, i32
  }
  func.func @transform_1(%arg0: i32) -> (i32, i32) {
    %c0_i32 = arith.constant 0 : i32
    %c0_i32_0 = arith.constant 0 : i32
    %c0_i32_1 = arith.constant 0 : i32
    return %c0_i32, %c0_i32_0 : i32, i32
  }
  func.func @transform_2(%arg0: i32) -> (i32, i32) {
    %c0_i32 = arith.constant 0 : i32
    %c0_i32_0 = arith.constant 0 : i32
    %c0_i32_1 = arith.constant 0 : i32
    return %c0_i32, %c0_i32_0 : i32, i32
  }
  func.func @transform_3(%arg0: i32) -> (i32, i32) {
    %c0_i32 = arith.constant 0 : i32
    %c0_i32_0 = arith.constant 0 : i32
    %c0_i32_1 = arith.constant 0 : i32
    return %c0_i32, %c0_i32_0 : i32, i32
  }
  func.func @transform_4(%arg0: i32) -> (i32, i32) {
    %c0_i32 = arith.constant 0 : i32
    %c0_i32_0 = arith.constant 0 : i32
    %c0_i32_1 = arith.constant 0 : i32
    return %c0_i32, %c0_i32_0 : i32, i32
  }
  func.func @transform_5(%arg0: i32) -> (i32, i32) {
    %c0_i32 = arith.constant 0 : i32
    %c0_i32_0 = arith.constant 0 : i32
    %c0_i32_1 = arith.constant 0 : i32
    return %c0_i32, %c0_i32_0 : i32, i32
  }
  func.func @transform_6(%arg0: i32) -> (i32, i32) {
    %c0_i32 = arith.constant 0 : i32
    %c0_i32_0 = arith.constant 0 : i32
    %c0_i32_1 = arith.constant 0 : i32
    return %c0_i32, %c0_i32_0 : i32, i32
  }
  func.func @transform_7(%arg0: i32) -> (i32, i32) {
    %c0_i32 = arith.constant 0 : i32
    %c0_i32_0 = arith.constant 0 : i32
    return %c0_i32, %arg0 : i32, i32
  }
}

</mosaic_0001>

<llo_original>
// kernel: tpu_custom_call.1
$region0: #{tpu_custom_call.1}
  #allocation0 [shape = 'u32[]', space=smem, size = 0x4, offset = 0x4, fixed_abs, tag = 'smem constant byte address 0x4 - core index']
  #allocation1 [shape = 'u32[144,128]{1,0:T(1,128)}', space=vmem, size = 0x12000, scoped, tag = 'internal scratch']
  %s0 = inlined_call_operand.hbm [shape: f32[16,512], index: 0, kind: input, shape index: {}]
  %s1 = inlined_call_operand.vmem [shape: bf16[8,16], index: 1, kind: input, shape index: {}]
  %s2 = inlined_call_operand.vmem [shape: f32[8,1], index: 2, kind: input, shape index: {}]
  %s3 = inlined_call_operand.vmem [shape: bf16[4,72], index: 3, kind: input, shape index: {}]
  %s4 = inlined_call_operand.vmem [shape: f32[4,1], index: 4, kind: input, shape index: {}]
  %s5 = inlined_call_operand.vmem [shape: bf16[16,4], index: 5, kind: input, shape index: {}]
  %s6 = inlined_call_operand.vmem [shape: f32[16,1], index: 6, kind: input, shape index: {}]
  %s7 = inlined_call_operand.hbm [shape: f32[16,512], index: 7, kind: output, shape index: {}]
  %s8 = sld [smem:[#allocation0]]
  $region65: #{tpu_custom_call.1} parent=0
    _
  %s10 = ssub.s32 1, %s8
  %s11 = scalar_select 0, %s10, %s8
  $region1: #{tpu_custom_call.1} parent=0
    #allocation2 [shape = 'u8[32768]{0}', space=vmem, size = 0x8000, scoped, tag = 'input window, operand 0']
    #allocation3 [shape = 's32[2]{0}', space=sflag, size = 0x8, scoped, tag = 'scoped memory for tpu_custom_call.1']
    #allocation4 [shape = 's32[2]{0}', space=sflag, size = 0x8, scoped, tag = 'scoped memory for tpu_custom_call.1']
    #allocation5 [shape = 'u8[32768]{0}', space=vmem, size = 0x8000, scoped, tag = 'output window, operand 0']
    %12 = vsyncpa [#allocation3], 0
    %s13 = scalar_lea.sflag [#allocation3], 1
    %14 = vsyncpa %s13, 0
    %15 = vsyncpa [#allocation4], 0
    %s16 = scalar_lea.sflag [#allocation4], 1
    %17 = vsyncpa %s16, 0
    loop: start=0, step=1, limit=4
    $region2: #{tpu_custom_call.1} parent=1 // loop_pre_header
      _
    $region3: #{tpu_custom_call.1} parent=1 // loop_header
      %s19 = sphi 0, %s23
      %p20 = scmp.ge.s32.totalorder %s19, 4
      %s29 = sphi 0, %s31
      %s32 = sphi 0, %s29
      %s33 = sphi 0, %s32
      %s49 = sphi 0, %s33
      %s53 = sphi 0, %s53
      %s55 = sphi 0, %s53
      %s56 = sphi 0, %s55
      %s70 = sphi 0, %s56
      %s74 = sphi 0, %s74
      %s76 = sphi 0, %s74
      %s77 = sphi 0, %s76
      %s91 = sphi 0, %s77
      %s95 = sphi 0, %s95
      %s97 = sphi 0, %s95
      %s98 = sphi 0, %s97
      %s112 = sphi 0, %s98
      %s116 = sphi 0, %s116
      %s118 = sphi 0, %s116
      %s119 = sphi 0, %s118
      %s133 = sphi 0, %s119
      %s137 = sphi 0, %s137
      %s139 = sphi 0, %s137
      %s140 = sphi 0, %s139
      %s154 = sphi 0, %s140
      %s158 = sphi 0, %s158
      %s160 = sphi 0, %s158
      %s161 = sphi 0, %s160
      %s175 = sphi 0, %s161
      %s181 = sphi 0, %s183
      %s184 = sphi 0, %s181
      %s185 = sphi 0, %s184
      %s201 = sphi 0, %s185
    $region4: #{tpu_custom_call.1} parent=1 // loop_header_branch
      %22 = sbr.rel (%p20) target = $region8
    $region5: #{tpu_custom_call.1} parent=1 // loop_body
      %s24 = ssub.s32 %s19, 1
      %s25 = ssub.s32 %s19, 2
      %s26 = sadd.s32 %s19, 1
      %s27 = ssub.s32 %s19, %s26
      %p28 = scmp.eq.s32.totalorder %s27, 0
      %s30 = sadd.s32 %s29, 1
      %s31 = scalar_select %p28, %s29, %s30
      %p34 = pneg %p28
      %p35 = scmp.eq.s32.totalorder %s19, 1
      %p36 = por %p34, %p35
      %p37 = scmp.ne.s32.totalorder %s29, %s32
      %p38 = scmp.eq.s32.totalorder %s19, 0
      %p39 = por %p37, %p38
      %p40 = scmp.ne.s32.totalorder %s29, %s32
      %p41 = scmp.eq.s32.totalorder %s24, 1
      %p42 = por %p40, %p41
      %p43 = scmp.ne.s32.totalorder %s32, %s33
      %p44 = scmp.eq.s32.totalorder %s24, 0
      %p45 = por %p43, %p44
      %p46 = scmp.ne.s32.totalorder %s32, %s33
      %p47 = scmp.eq.s32.totalorder %s25, 1
      %p48 = por %p46, %p47
      %p50 = scmp.ne.s32.totalorder %s33, %s49
      %p51 = scmp.eq.s32.totalorder %s25, 0
      %p52 = por %p50, %p51
      %s54 = sadd.s32 %s53, 1
      %p57 = scmp.eq.s32.totalorder %s19, 1
      %p58 = scmp.ne.s32.totalorder %s53, %s55
      %p59 = scmp.eq.s32.totalorder %s19, 0
      %p60 = por %p58, %p59
      %p61 = scmp.ne.s32.totalorder %s53, %s55
      %p62 = scmp.eq.s32.totalorder %s24, 1
      %p63 = por %p61, %p62
      %p64 = scmp.ne.s32.totalorder %s55, %s56
      %p65 = scmp.eq.s32.totalorder %s24, 0
      %p66 = por %p64, %p65
      %p67 = scmp.ne.s32.totalorder %s55, %s56
      %p68 = scmp.eq.s32.totalorder %s25, 1
      %p69 = por %p67, %p68
      %p71 = scmp.ne.s32.totalorder %s56, %s70
      %p72 = scmp.eq.s32.totalorder %s25, 0
      %p73 = por %p71, %p72
      %s75 = sadd.s32 %s74, 1
      %p78 = scmp.eq.s32.totalorder %s19, 1
      %p79 = scmp.ne.s32.totalorder %s74, %s76
      %p80 = scmp.eq.s32.totalorder %s19, 0
      %p81 = por %p79, %p80
      %p82 = scmp.ne.s32.totalorder %s74, %s76
      %p83 = scmp.eq.s32.totalorder %s24, 1
      %p84 = por %p82, %p83
      %p85 = scmp.ne.s32.totalorder %s76, %s77
      %p86 = scmp.eq.s32.totalorder %s24, 0
      %p87 = por %p85, %p86
      %p88 = scmp.ne.s32.totalorder %s76, %s77
      %p89 = scmp.eq.s32.totalorder %s25, 1
      %p90 = por %p88, %p89
      %p92 = scmp.ne.s32.totalorder %s77, %s91
      %p93 = scmp.eq.s32.totalorder %s25, 0
      %p94 = por %p92, %p93
      %s96 = sadd.s32 %s95, 1
      %p99 = scmp.eq.s32.totalorder %s19, 1
      %p100 = scmp.ne.s32.totalorder %s95, %s97
      %p101 = scmp.eq.s32.totalorder %s19, 0
      %p102 = por %p100, %p101
      %p103 = scmp.ne.s32.totalorder %s95, %s97
      %p104 = scmp.eq.s32.totalorder %s24, 1
      %p105 = por %p103, %p104
      %p106 = scmp.ne.s32.totalorder %s97, %s98
      %p107 = scmp.eq.s32.totalorder %s24, 0
      %p108 = por %p106, %p107
      %p109 = scmp.ne.s32.totalorder %s97, %s98
      %p110 = scmp.eq.s32.totalorder %s25, 1
      %p111 = por %p109, %p110
      %p113 = scmp.ne.s32.totalorder %s98, %s112
      %p114 = scmp.eq.s32.totalorder %s25, 0
      %p115 = por %p113, %p114
      %s117 = sadd.s32 %s116, 1
      %p120 = scmp.eq.s32.totalorder %s19, 1
      %p121 = scmp.ne.s32.totalorder %s116, %s118
      %p122 = scmp.eq.s32.totalorder %s19, 0
      %p123 = por %p121, %p122
      %p124 = scmp.ne.s32.totalorder %s116, %s118
      %p125 = scmp.eq.s32.totalorder %s24, 1
      %p126 = por %p124, %p125
      %p127 = scmp.ne.s32.totalorder %s118, %s119
      %p128 = scmp.eq.s32.totalorder %s24, 0
      %p129 = por %p127, %p128
      %p130 = scmp.ne.s32.totalorder %s118, %s119
      %p131 = scmp.eq.s32.totalorder %s25, 1
      %p132 = por %p130, %p131
      %p134 = scmp.ne.s32.totalorder %s119, %s133
      %p135 = scmp.eq.s32.totalorder %s25, 0
      %p136 = por %p134, %p135
      %s138 = sadd.s32 %s137, 1
      %p141 = scmp.eq.s32.totalorder %s19, 1
      %p142 = scmp.ne.s32.totalorder %s137, %s139
      %p143 = scmp.eq.s32.totalorder %s19, 0
      %p144 = por %p142, %p143
      %p145 = scmp.ne.s32.totalorder %s137, %s139
      %p146 = scmp.eq.s32.totalorder %s24, 1
      %p147 = por %p145, %p146
      %p148 = scmp.ne.s32.totalorder %s139, %s140
      %p149 = scmp.eq.s32.totalorder %s24, 0
      %p150 = por %p148, %p149
      %p151 = scmp.ne.s32.totalorder %s139, %s140
      %p152 = scmp.eq.s32.totalorder %s25, 1
      %p153 = por %p151, %p152
      %p155 = scmp.ne.s32.totalorder %s140, %s154
      %p156 = scmp.eq.s32.totalorder %s25, 0
      %p157 = por %p155, %p156
      %s159 = sadd.s32 %s158, 1
      %p162 = scmp.eq.s32.totalorder %s19, 1
      %p163 = scmp.ne.s32.totalorder %s158, %s160
      %p164 = scmp.eq.s32.totalorder %s19, 0
      %p165 = por %p163, %p164
      %p166 = scmp.ne.s32.totalorder %s158, %s160
      %p167 = scmp.eq.s32.totalorder %s24, 1
      %p168 = por %p166, %p167
      %p169 = scmp.ne.s32.totalorder %s160, %s161
      %p170 = scmp.eq.s32.totalorder %s24, 0
      %p171 = por %p169, %p170
      %p172 = scmp.ne.s32.totalorder %s160, %s161
      %p173 = scmp.eq.s32.totalorder %s25, 1
      %p174 = por %p172, %p173
      %p176 = scmp.ne.s32.totalorder %s161, %s175
      %p177 = scmp.eq.s32.totalorder %s25, 0
      %p178 = por %p176, %p177
      %s179 = ssub.s32 %s19, %s26
      %p180 = scmp.eq.s32.totalorder %s179, 0
      %s182 = sadd.s32 %s181, 1
      %s183 = scalar_select %p180, %s181, %s182
      %p186 = pneg %p180
      %p187 = scmp.eq.s32.totalorder %s19, 1
      %p188 = por %p186, %p187
      %p189 = scmp.ne.s32.totalorder %s181, %s184
      %p190 = scmp.eq.s32.totalorder %s19, 0
      %p191 = por %p189, %p190
      %p192 = scmp.ne.s32.totalorder %s181, %s184
      %p193 = scmp.eq.s32.totalorder %s24, 1
      %p194 = por %p192, %p193
      %p195 = scmp.ne.s32.totalorder %s184, %s185
      %p196 = scmp.eq.s32.totalorder %s24, 0
      %p197 = por %p195, %p196
      %p198 = scmp.ne.s32.totalorder %s184, %s185
      %p199 = scmp.eq.s32.totalorder %s25, 1
      %p200 = por %p198, %p199
      %p202 = scmp.ne.s32.totalorder %s185, %s201
      %p203 = scmp.eq.s32.totalorder %s25, 0
      %p204 = por %p202, %p203
      %p205 = scmp.le.s32.totalorder 1, %s19
      %p206 = scmp.lt.s32.totalorder %s19, 3
      %p207 = pnand %p205, %p206
      %p208 = pneg %p207
      // Predicated region
      $region9: #{tpu_custom_call.1} parent=5 // pred_check
        _
      $region10: #{tpu_custom_call.1} parent=5 // pred_check_branch
        %210 = sbr.rel (%p207) target = $region12
      $region11: #{tpu_custom_call.1} parent=5 // pred_region
        %s211 = ssub.s32 %s19, 1
        // Predicated region
        $region13: #{tpu_custom_call.1} parent=11 // pred_check
          %p212 = pneg %p66
        $region14: #{tpu_custom_call.1} parent=11 // pred_check_branch
          %214 = sbr.rel (%p212) target = $region16
        $region15: #{tpu_custom_call.1} parent=11 // pred_region
          _
        $region16: #{tpu_custom_call.1} parent=11 // pred_fallthru
          _
        // Predicated region
        $region17: #{tpu_custom_call.1} parent=11 // pred_check
          %p215 = pneg %p87
        $region18: #{tpu_custom_call.1} parent=11 // pred_check_branch
          %217 = sbr.rel (%p215) target = $region20
        $region19: #{tpu_custom_call.1} parent=11 // pred_region
          _
        $region20: #{tpu_custom_call.1} parent=11 // pred_fallthru
          _
        // Predicated region
        $region21: #{tpu_custom_call.1} parent=11 // pred_check
          %p218 = pneg %p108
        $region22: #{tpu_custom_call.1} parent=11 // pred_check_branch
          %220 = sbr.rel (%p218) target = $region24
        $region23: #{tpu_custom_call.1} parent=11 // pred_region
          _
        $region24: #{tpu_custom_call.1} parent=11 // pred_fallthru
          _
        // Predicated region
        $region25: #{tpu_custom_call.1} parent=11 // pred_check
          %p221 = pneg %p129
        $region26: #{tpu_custom_call.1} parent=11 // pred_check_branch
          %223 = sbr.rel (%p221) target = $region28
        $region27: #{tpu_custom_call.1} parent=11 // pred_region
          _
        $region28: #{tpu_custom_call.1} parent=11 // pred_fallthru
          _
        // Predicated region
        $region29: #{tpu_custom_call.1} parent=11 // pred_check
          %p224 = pneg %p150
        $region30: #{tpu_custom_call.1} parent=11 // pred_check_branch
          %226 = sbr.rel (%p224) target = $region32
        $region31: #{tpu_custom_call.1} parent=11 // pred_region
          _
        $region32: #{tpu_custom_call.1} parent=11 // pred_fallthru
          _
        // Predicated region
        $region33: #{tpu_custom_call.1} parent=11 // pred_check
          %p227 = pneg %p171
        $region34: #{tpu_custom_call.1} parent=11 // pred_check_branch
          %229 = sbr.rel (%p227) target = $region36
        $region35: #{tpu_custom_call.1} parent=11 // pred_region
          _
        $region36: #{tpu_custom_call.1} parent=11 // pred_fallthru
          _
      $region12: #{tpu_custom_call.1} parent=5 // pred_fallthru
        _
      %p230 = scmp.lt.s32.totalorder %s19, 2
      // Predicated region
      $region37: #{tpu_custom_call.1} parent=5 // pred_check
        %p231 = pneg %p230
      $region38: #{tpu_custom_call.1} parent=5 // pred_check_branch
        %233 = sbr.rel (%p231) target = $region40
      $region39: #{tpu_custom_call.1} parent=5 // pred_region
        // Predicated region
        $region41: #{tpu_custom_call.1} parent=39 // pred_check
          %p234 = pneg %p39
        $region42: #{tpu_custom_call.1} parent=39 // pred_check_branch
          %236 = sbr.rel (%p234) target = $region44
        $region43: #{tpu_custom_call.1} parent=39 // pred_region
          %s237 = sand.u32 %s29, 1
          %s238 = scalar_lea.sflag [#allocation3], %s237
          %s239 = sand.u32 %s29, 1
          %s240 = smul.addr %s239, 32
          %s241 = scalar_lea.vmem [#allocation2], %s240
          %s242 = smul.u32 2, %s19
          %s244 = ssub.s32 512, 512
          %245 = vsyncadd %s238, %s244
          %s246 = smul.addr %s242, 128
          %s247 = scalar_lea.hbm %s0, %s246
          %s248 = sshll.u32 %s241, 4
          %s249 = int_to_ptr.vmem [resolvable:$true] %s248
          %254 = dma.hbm_to_vmem [thread:$0]  %s247, 512, %s249, %s238, 512, 256, 16
        $region44: #{tpu_custom_call.1} parent=39 // pred_fallthru
          _
      $region40: #{tpu_custom_call.1} parent=5 // pred_fallthru
        _
      %p255 = scmp.le.s32.totalorder 1, %s19
      %p256 = scmp.lt.s32.totalorder %s19, 3
      %p257 = pnand %p255, %p256
      %p258 = pneg %p257
      // Predicated region
      $region45: #{tpu_custom_call.1} parent=5 // pred_check
        _
      $region46: #{tpu_custom_call.1} parent=5 // pred_check_branch
        %260 = sbr.rel (%p257) target = $region48
      $region47: #{tpu_custom_call.1} parent=5 // pred_region
        %s261 = ssub.s32 %s19, 1
        %s262 = sand.u32 %s32, 1
        %s263 = scalar_lea.sflag [#allocation3], %s262
        %s264 = sand.u32 %s32, 1
        %s265 = smul.addr %s264, 32
        %s266 = scalar_lea.vmem [#allocation2], %s265
        // Predicated region
        $region49: #{tpu_custom_call.1} parent=47 // pred_check
          %p267 = pneg %p45
        $region50: #{tpu_custom_call.1} parent=47 // pred_check_branch
          %269 = sbr.rel (%p267) target = $region52
        $region51: #{tpu_custom_call.1} parent=47 // pred_region
          %270 = dma.done %s263, 512
        $region52: #{tpu_custom_call.1} parent=47 // pred_fallthru
          _
        %s271 = sand.u32 %s32, 1
        %s272 = scalar_lea.sflag [#allocation3], %s271
        %s273 = sand.u32 %s32, 1
        %s274 = smul.addr %s273, 32
        %s275 = scalar_lea.vmem [#allocation2], %s274
        %p276 = pneg %p45
        %p277 = pneg %p42
        %p278 = pneg %p66
        %p279 = pneg %p63
        %p280 = pneg %p87
        %p281 = pneg %p84
        %p282 = pneg %p108
        %p283 = pneg %p105
        %p284 = pneg %p129
        %p285 = pneg %p126
        %p286 = pneg %p150
        %p287 = pneg %p147
        %p288 = pneg %p171
        %p289 = pneg %p168
        %p290 = pneg %p197
        %p291 = pneg %p194
        %s292 = sand.u32 %s184, 1
        %s293 = scalar_lea.sflag [#allocation4], %s292
        %s294 = sand.u32 %s184, 1
        %s295 = smul.addr %s294, 32
        %s296 = scalar_lea.vmem [#allocation5], %s295
        %s297 = smul.u32 2, %s24
        %s298 = smul.u32 2, %s24
        %v300 = vlaneseq
        %v301 = vand.u32 %v300, 127
        %v302 = vadd.s32 %v301, 128
        %v303 = vand.u32 %v301, 255
        %v304 = vand.u32 %v302, 255
        %v305 = vand.u32 %v303, 15
        %v306 = vand.u32 %v304, 15
        %v307 = vshra.s32 %v303, 4
        %v308 = vshra.s32 %v304, 4
        %vm309 = vcmp.gt.s32.totalorder %v305, 0
        %vm310 = vcmp.gt.s32.totalorder %v306, 0
        %vm311 = vcmp.lt.s32.totalorder %v305, 15
        %vm312 = vcmp.lt.s32.totalorder %v306, 15
        %vm313 = vcmp.gt.s32.totalorder %v307, 0
        %vm314 = vcmp.gt.s32.totalorder %v308, 0
        %vm315 = vcmp.lt.s32.totalorder %v307, 15
        %vm316 = vcmp.lt.s32.totalorder %v308, 15
        %v317 = vld [vmem:[%s1] sm:$0xf]
        %v318 = vld [vmem:[%s266] sm:$0xff]
        %v319 = vld [vmem:[%s266 + $0x8] sm:$0xff]
        %v320 = vld [vmem:[%s266 + $0x10] sm:$0xff]
        %v321 = vld [vmem:[%s266 + $0x18] sm:$0xff]
        %v322 = vpack.c.bf16 %v320, %v318
        %v323 = vpack.c.bf16 %v321, %v319
        %v324 = vld [vmem:[%s2] sm:$0xff]
        %326 = vset.pattern.permute.xlu0 0
        %327 = vperm.xlu0 %326, %v324
        %v328 = vpop.permute.xlu0 %327
        %vm330 = vcmask 130048
        %v332 = vsel %vm330, %v317, 0
        %334 = vmatprep.subr.bf16.mxu0 %v323
        %335 = vmatpush1.bf16.msra.mxu0 %v322
        %336 = vmatprep.subr.bf16.mxu0 0
        %337 = vmatpush1.bf16.msra.mxu0 0
        %338 = vmatprep.subr.bf16.mxu0 0
        %339 = vmatpush1.bf16.msra.mxu0 0
        %340 = vmatprep.subr.bf16.mxu0 0
        %341 = vmatpush1.bf16.msra.mxu0 0
        %342 = vmatprep.subr.bf16.mxu0 0
        %343 = vmatpush1.bf16.msra.mxu0 0
        %344 = vmatprep.subr.bf16.mxu0 0
        %345 = vmatpush1.bf16.msra.mxu0 0
        %346 = vmatprep.subr.bf16.mxu0 0
        %347 = vmatpush1.bf16.msra.mxu0 0
        %348 = vmatprep.subr.bf16.mxu0 0
        %349 = vmatpush1.bf16.msra.mxu0 0
        %350 = vmatprep.subr.bf16.mxu0 0
        %351 = vmatpush1.bf16.msra.mxu0 0
        %352 = vmatprep.subr.bf16.mxu0 0
        %353 = vmatpush1.bf16.msra.mxu0 0
        %354 = vmatprep.subr.bf16.mxu0 0
        %355 = vmatpush1.bf16.msra.mxu0 0
        %356 = vmatprep.subr.bf16.mxu0 0
        %357 = vmatpush1.bf16.msra.mxu0 0
        %358 = vmatprep.subr.bf16.mxu0 0
        %359 = vmatpush1.bf16.msra.mxu0 0
        %360 = vmatprep.subr.bf16.mxu0 0
        %361 = vmatpush1.bf16.msra.mxu0 0
        %362 = vmatprep.subr.bf16.mxu0 0
        %363 = vmatpush1.bf16.msra.mxu0 0
        %364 = vmatprep.subr.bf16.mxu0 0
        %365 = vmatpush1.bf16.msra.mxu0 0
        %366 = vmatprep.mubr.bf16.mxu0 0
        %367 = vmatmul.mubr.bf16.gmra.mrb[0].mxu0 %v332
        %v368 = vpop.f32.mrb[0].mxu0
        %v369 = vadd.f32 %v328, %v368
        %v370 = vpop.f32.mrb[0].mxu0
        %v371 = vadd.f32 %v328, %v370
        %v372 = vpop.f32.mrb[0].mxu0
        %v373 = vpop.f32.mrb[0].mxu0
        %374 = vdwg.mxu0
        %v375 = vmax.f32 %v369, 0.0
        %v376 = vmax.f32 %v371, 0.0
        %377 = vrot.lane.b32.xlu0 %v375, 17
        %v378 = vpop.permute.xlu0 %377
        %379 = vrot.lane.b32.xlu0 %v376, 17
        %v380 = vpop.permute.xlu0 %379
        %vm381 = vcmp.lt.s32.totalorder %v301, 17
        %v382 = vsel %vm381, %v378, %v380
        %v383 = vsel %vm381, %v380, %v378
        %vm384 = vmand %vm313, %vm309
        %vm385 = vmand %vm314, %vm310
        %v386 = vsel %vm384, %v383, 0.0
        %v387 = vsel %vm385, %v382, 0.0
        %388 = vrot.lane.b32.xlu0 %v375, 16
        %v389 = vpop.permute.xlu0 %388
        %390 = vrot.lane.b32.xlu0 %v376, 16
        %v391 = vpop.permute.xlu0 %390
        %vm392 = vcmp.lt.s32.totalorder %v301, 16
        %v393 = vsel %vm392, %v389, %v391
        %v394 = vsel %vm392, %v391, %v389
        %v395 = vsel %vm313, %v394, 0.0
        %v396 = vsel %vm314, %v393, 0.0
        %397 = vrot.lane.b32.xlu0 %v375, 15
        %v398 = vpop.permute.xlu0 %397
        %399 = vrot.lane.b32.xlu0 %v376, 15
        %v400 = vpop.permute.xlu0 %399
        %vm401 = vcmp.lt.s32.totalorder %v301, 15
        %v402 = vsel %vm401, %v398, %v400
        %v403 = vsel %vm401, %v400, %v398
        %vm404 = vmand %vm313, %vm311
        %vm405 = vmand %vm314, %vm312
        %v406 = vsel %vm404, %v403, 0.0
        %v407 = vsel %vm405, %v402, 0.0
        %408 = vrot.lane.b32.xlu0 %v375, 1
        %v409 = vpop.permute.xlu0 %408
        %410 = vrot.lane.b32.xlu0 %v376, 1
        %v411 = vpop.permute.xlu0 %410
        %vm412 = vcmp.lt.s32.totalorder %v301, 1
        %v413 = vsel %vm412, %v409, %v411
        %v414 = vsel %vm412, %v411, %v409
        %v415 = vsel %vm309, %v414, 0.0
        %v416 = vsel %vm310, %v413, 0.0
        %417 = vrot.lane.b32.xlu0 %v375, 127
        %v418 = vpop.permute.xlu0 %417
        %419 = vrot.lane.b32.xlu0 %v376, 127
        %v420 = vpop.permute.xlu0 %419
        %vm421 = vcmp.lt.s32.totalorder %v301, 127
        %v422 = vsel %vm421, %v418, %v420
        %v423 = vsel %vm421, %v420, %v418
        %v424 = vsel %vm311, %v422, 0.0
        %v425 = vsel %vm312, %v423, 0.0
        %426 = vrot.lane.b32.xlu0 %v375, 113
        %v427 = vpop.permute.xlu0 %426
        %428 = vrot.lane.b32.xlu0 %v376, 113
        %v429 = vpop.permute.xlu0 %428
        %vm430 = vcmp.lt.s32.totalorder %v301, 113
        %v431 = vsel %vm430, %v427, %v429
        %v432 = vsel %vm430, %v429, %v427
        %vm433 = vmand %vm315, %vm309
        %vm434 = vmand %vm316, %vm310
        %v435 = vsel %vm433, %v431, 0.0
        %v436 = vsel %vm434, %v432, 0.0
        %437 = vrot.lane.b32.xlu0 %v375, 112
        %v438 = vpop.permute.xlu0 %437
        %439 = vrot.lane.b32.xlu0 %v376, 112
        %v440 = vpop.permute.xlu0 %439
        %vm441 = vcmp.lt.s32.totalorder %v301, 112
        %v442 = vsel %vm441, %v438, %v440
        %v443 = vsel %vm441, %v440, %v438
        %v444 = vsel %vm315, %v442, 0.0
        %v445 = vsel %vm316, %v443, 0.0
        %446 = vrot.lane.b32.xlu0 %v375, 111
        %v447 = vpop.permute.xlu0 %446
        %448 = vrot.lane.b32.xlu0 %v376, 111
        %v449 = vpop.permute.xlu0 %448
        %vm450 = vcmp.lt.s32.totalorder %v301, 111
        %v451 = vsel %vm450, %v447, %v449
        %v452 = vsel %vm450, %v449, %v447
        %vm453 = vmand %vm315, %vm311
        %vm454 = vmand %vm316, %vm312
        %v455 = vsel %vm453, %v451, 0.0
        %v456 = vsel %vm454, %v452, 0.0
        %v457 = vld [vmem:[%s3] sm:$0x3]
        %v458 = vpack.c.bf16 %v395, %v386
        %v459 = vpack.c.bf16 %v396, %v387
        %v460 = vpack.c.bf16 %v415, %v406
        %v461 = vpack.c.bf16 %v416, %v407
        %v462 = vpack.c.bf16 %v424, %v375
        %v463 = vpack.c.bf16 %v425, %v376
        %v464 = vpack.c.bf16 %v444, %v435
        %v465 = vpack.c.bf16 %v445, %v436
        %v466 = vpack.c.bf16 %v455, %v455
        %v467 = vpack.c.bf16 %v456, %v456
        %v468 = vld [vmem:[%s4] sm:$0xf]
        %470 = vset.pattern.permute.xlu0 0
        %471 = vperm.xlu0 %470, %v468
        %v472 = vpop.permute.xlu0 %471
        %vm474 = vcmask 588800
        %v476 = vsel %vm474, %v457, 0
        %vm478 = vcmask 1043456
        %v480 = vsel %vm478, %v466, 0
        %v483 = vsel %vm478, %v467, 0
        %485 = vmatprep.subr.bf16.mxu0 %v459
        %486 = vmatpush1.bf16.msra.mxu0 %v458
        %487 = vmatprep.subr.bf16.mxu0 %v461
        %488 = vmatpush1.bf16.msra.mxu0 %v460
        %489 = vmatprep.subr.bf16.mxu0 %v463
        %490 = vmatpush1.bf16.msra.mxu0 %v462
        %491 = vmatprep.subr.bf16.mxu0 %v465
        %492 = vmatpush1.bf16.msra.mxu0 %v464
        %493 = vmatprep.subr.bf16.mxu0 %v483
        %494 = vmatpush1.bf16.msra.mxu0 %v480
        %495 = vmatprep.subr.bf16.mxu0 0
        %496 = vmatpush1.bf16.msra.mxu0 0
        %497 = vmatprep.subr.bf16.mxu0 0
        %498 = vmatpush1.bf16.msra.mxu0 0
        %499 = vmatprep.subr.bf16.mxu0 0
        %500 = vmatpush1.bf16.msra.mxu0 0
        %501 = vmatprep.subr.bf16.mxu0 0
        %502 = vmatpush1.bf16.msra.mxu0 0
        %503 = vmatprep.subr.bf16.mxu0 0
        %504 = vmatpush1.bf16.msra.mxu0 0
        %505 = vmatprep.subr.bf16.mxu0 0
        %506 = vmatpush1.bf16.msra.mxu0 0
        %507 = vmatprep.subr.bf16.mxu0 0
        %508 = vmatpush1.bf16.msra.mxu0 0
        %509 = vmatprep.subr.bf16.mxu0 0
        %510 = vmatpush1.bf16.msra.mxu0 0
        %511 = vmatprep.subr.bf16.mxu0 0
        %512 = vmatpush1.bf16.msra.mxu0 0
        %513 = vmatprep.subr.bf16.mxu0 0
        %514 = vmatpush1.bf16.msra.mxu0 0
        %515 = vmatprep.subr.bf16.mxu0 0
        %516 = vmatpush1.bf16.msra.mxu0 0
        %517 = vmatprep.mubr.bf16.mxu0 0
        %518 = vmatmul.mubr.bf16.gmra.mrb[0].mxu0 %v476
        %v519 = vpop.f32.mrb[0].mxu0
        %v520 = vadd.f32 %v472, %v519
        %v521 = vpop.f32.mrb[0].mxu0
        %v522 = vadd.f32 %v472, %v521
        %v523 = vpop.f32.mrb[0].mxu0
        %v524 = vpop.f32.mrb[0].mxu0
        %525 = vdwg.mxu0
        %v526 = vmax.f32 %v520, 0.0
        %v527 = vmax.f32 %v522, 0.0
        %v528 = vld [vmem:[%s5] sm:$0xf]
        %v529 = vld [vmem:[%s5 + $0x4] sm:$0xf]
        %v530 = vpack.c.bf16 %v526, %v526
        %v531 = vpack.c.bf16 %v527, %v527
        %v532 = vld [vmem:[%s6] sm:$0xff]
        %v533 = vld [vmem:[%s6 + $0x8] sm:$0xff]
        %535 = vset.pattern.permute.xlu0 0
        %536 = vperm.xlu0 %535, %v532
        %v537 = vpop.permute.xlu0 %536
        %540 = vset.pattern.permute.xlu0 0
        %541 = vperm.xlu0 %540, %v533
        %v542 = vpop.permute.xlu0 %541
        %v546 = vunpack.c.l.b16 %v528
        %v547 = vunpack.c.l.b16 %v529
        %v548 = vpack.c.b16 %v547, %v546
        %vm549 = vcmask 31744
        %v551 = vsel %vm549, %v548, 0
        %vm553 = vcmask 1041408
        %v555 = vsel %vm553, %v530, 0
        %v558 = vsel %vm553, %v531, 0
        %560 = vmatprep.subr.bf16.mxu0 %v558
        %561 = vmatpush1.bf16.msra.mxu0 %v555
        %562 = vmatprep.subr.bf16.mxu0 0
        %563 = vmatpush1.bf16.msra.mxu0 0
        %564 = vmatprep.subr.bf16.mxu0 0
        %565 = vmatpush1.bf16.msra.mxu0 0
        %566 = vmatprep.subr.bf16.mxu0 0
        %567 = vmatpush1.bf16.msra.mxu0 0
        %568 = vmatprep.subr.bf16.mxu0 0
        %569 = vmatpush1.bf16.msra.mxu0 0
        %570 = vmatprep.subr.bf16.mxu0 0
        %571 = vmatpush1.bf16.msra.mxu0 0
        %572 = vmatprep.subr.bf16.mxu0 0
        %573 = vmatpush1.bf16.msra.mxu0 0
        %574 = vmatprep.subr.bf16.mxu0 0
        %575 = vmatpush1.bf16.msra.mxu0 0
        %576 = vmatprep.subr.bf16.mxu0 0
        %577 = vmatpush1.bf16.msra.mxu0 0
        %578 = vmatprep.subr.bf16.mxu0 0
        %579 = vmatpush1.bf16.msra.mxu0 0
        %580 = vmatprep.subr.bf16.mxu0 0
        %581 = vmatpush1.bf16.msra.mxu0 0
        %582 = vmatprep.subr.bf16.mxu0 0
        %583 = vmatpush1.bf16.msra.mxu0 0
        %584 = vmatprep.subr.bf16.mxu0 0
        %585 = vmatpush1.bf16.msra.mxu0 0
        %586 = vmatprep.subr.bf16.mxu0 0
        %587 = vmatpush1.bf16.msra.mxu0 0
        %588 = vmatprep.subr.bf16.mxu0 0
        %589 = vmatpush1.bf16.msra.mxu0 0
        %590 = vmatprep.subr.bf16.mxu0 0
        %591 = vmatpush1.bf16.msra.mxu0 0
        %592 = vmatprep.mubr.bf16.mxu0 0
        %593 = vmatmul.mubr.bf16.gmra.mrb[0].mxu0 %v551
        %v594 = vpop.f32.mrb[0].mxu0
        %v595 = vadd.f32 %v537, %v594
        %v596 = vpop.f32.mrb[0].mxu0
        %v597 = vadd.f32 %v537, %v596
        %v598 = vpop.f32.mrb[0].mxu0
        %v599 = vadd.f32 %v542, %v598
        %v600 = vpop.f32.mrb[0].mxu0
        %v601 = vadd.f32 %v542, %v600
        %602 = vdwg.mxu0
        %v603 = vadd.f32 %v595, %v318
        %v604 = vadd.f32 %v597, %v319
        %v605 = vadd.f32 %v599, %v320
        %v606 = vadd.f32 %v601, %v321
        %v607 = vmax.f32 %v603, 0.0
        %v608 = vmax.f32 %v604, 0.0
        %v609 = vmax.f32 %v605, 0.0
        %v610 = vmax.f32 %v606, 0.0
        %611 = vst [vmem:[%s296] sm:$0xff] %v607
        %612 = vst [vmem:[%s296 + $0x8] sm:$0xff] %v608
        %613 = vst [vmem:[%s296 + $0x10] sm:$0xff] %v609
        %614 = vst [vmem:[%s296 + $0x18] sm:$0xff] %v610
        %s615 = sand.u32 %s184, 1
        %s616 = scalar_lea.sflag [#allocation4], %s615
        %s617 = sand.u32 %s184, 1
        %s618 = smul.addr %s617, 32
        %s619 = scalar_lea.vmem [#allocation5], %s618
        // Predicated region
        $region53: #{tpu_custom_call.1} parent=47 // pred_check
          %p620 = pneg %p194
        $region54: #{tpu_custom_call.1} parent=47 // pred_check_branch
          %622 = sbr.rel (%p620) target = $region56
        $region55: #{tpu_custom_call.1} parent=47 // pred_region
          %s623 = smul.u32 2, %s24
          %s625 = ssub.s32 512, 512
          %626 = vsyncadd %s616, %s625
          %s627 = smul.addr %s623, 128
          %s628 = scalar_lea.hbm %s7, %s627
          %s629 = sshll.u32 %s619, 4
          %s630 = int_to_ptr.vmem [resolvable:$true] %s629
          %635 = dma.vmem_to_hbm [thread:$0]  %s630, 512, %s628, %s616, 256, 512, 16
        $region56: #{tpu_custom_call.1} parent=47 // pred_fallthru
          _
      $region48: #{tpu_custom_call.1} parent=5 // pred_fallthru
        _
      %p636 = scmp.le.s32.totalorder 2, %s19
      // Predicated region
      $region57: #{tpu_custom_call.1} parent=5 // pred_check
        %p637 = pneg %p636
      $region58: #{tpu_custom_call.1} parent=5 // pred_check_branch
        %639 = sbr.rel (%p637) target = $region60
      $region59: #{tpu_custom_call.1} parent=5 // pred_region
        %s640 = ssub.s32 %s19, 2
        // Predicated region
        $region61: #{tpu_custom_call.1} parent=59 // pred_check
          %p641 = pneg %p200
        $region62: #{tpu_custom_call.1} parent=59 // pred_check_branch
          %643 = sbr.rel (%p641) target = $region64
        $region63: #{tpu_custom_call.1} parent=59 // pred_region
          %s644 = sand.u32 %s185, 1
          %s645 = scalar_lea.sflag [#allocation4], %s644
          %s646 = sand.u32 %s185, 1
          %s647 = smul.addr %s646, 32
          %s648 = scalar_lea.vmem [#allocation5], %s647
          %649 = dma.done %s645, 512
        $region64: #{tpu_custom_call.1} parent=59 // pred_fallthru
          _
      $region60: #{tpu_custom_call.1} parent=5 // pred_fallthru
        _
    $region6: #{tpu_custom_call.1} parent=1 // loop_footer
      %s23 = sadd.s32 1, %s19
    $region7: #{tpu_custom_call.1} parent=1 // loop_footer_branch
      %18 = sbr.rel target = $region3
    $region8: #{tpu_custom_call.1} parent=1 // loop_exit
      _
    %650 = vsyncpa [#allocation3], 1
    %s651 = scalar_lea.sflag [#allocation3], 1
    %652 = vsyncpa %s651, 1
    %653 = vsyncpa [#allocation4], 1
    %s654 = scalar_lea.sflag [#allocation4], 1
    %655 = vsyncpa %s654, 1

</llo_original>
